<compile_context>
chip_gen: v6e
topology: v6e:2x2x1
jax: 0.10.0
libtpu: 0.0.40
codegen_flags: <defaults>
</compile_context>

<pallas_src>
import numpy as np
import jax
import jax.numpy as jnp
from jax.experimental import pallas as pl
from jax.experimental.pallas import tpu as pltpu

_LANES = 128
_SMALL_INPUT_BYTES = 512 << 10        # per-array bypass threshold (~1 MiB combined)
_V7X_SPLIT_TRAFFIC_BYTES = 4 << 20    # split across both v7x TCs above this HBM traffic


def _round_up(x, m):
    return ((x + m - 1) // m) * m


def _tpu_generation():
    """Best-effort device-kind sniff; conservative defaults if it fails."""
    try:
        kind = jax.devices()[0].device_kind.lower()
    except Exception:
        kind = ""
    is_v7 = ("v7" in kind) or ("tpu7" in kind)
    is_v6 = "v6" in kind
    return is_v6, is_v7


def _vmem_budget_bytes(is_v6, is_v7):
    # Target for the double-buffered working set of all 4 buffers (2 in + 2 out).
    # v6e/v7x scoped-VMEM default is 32 MiB -> aim ~24 MiB; v5e/unknown -> ~12 MiB.
    return (24 << 20) if (is_v6 or is_v7) else (12 << 20)


def _complex_relu_kernel(real_ref, imag_ref, out_r_ref, out_i_ref):
    # Exact mask-multiply (matches PyTorch for NaN/inf corner cases); pure VPU work,
    # fully hidden under the HBM DMA for these block sizes.
    r = real_ref[...]
    mask = (r >= 0).astype(r.dtype)
    out_r_ref[...] = mask * r
    i = imag_ref[...]
    out_i_ref[...] = mask.astype(i.dtype) * i


def _complex_relu_jnp(real, img):
    mask = (real >= 0).astype(real.dtype)
    return mask * real, mask.astype(img.dtype) * img


def complex_relu_pallas(real, img, *, force_pallas=False, in_place=False):
    """Elementwise complex ReLU: (mask*real, mask*img) with mask = 1.0*(real >= 0)."""
    if real.shape != img.shape:
        raise ValueError(f"real/img shape mismatch: {real.shape} vs {img.shape}")
    orig_shape = real.shape
    total = int(np.prod(orig_shape)) if len(orig_shape) else 1
    r_item = jnp.dtype(real.dtype).itemsize
    i_item = jnp.dtype(img.dtype).itemsize

    # (1) Tiny inputs: dispatch + pipeline prologue dominate -> fused XLA elementwise.
    # (2) Non-lane-dense totals: a last dim not a multiple of 128 would emit masked
    #     vst.msk partial stores (the biggest measured layout penalty); refuse that
    #     Pallas path entirely and fall back to jnp.
    lane_dense = (total > 0) and (total % _LANES == 0)
    small = total * max(r_item, i_item) < _SMALL_INPUT_BYTES
    if (not lane_dense) or (small and not force_pallas):
        return _complex_relu_jnp(real, img)

    # Lane-dense 2-D view: contiguous row-major reshape -> metadata-only, no HBM copy.
    # Prefer the widest C = k*128 (k <= 16) dividing `total` while keeping >= 8 rows
    # so sublanes stay full; default to C = 128.
    C = _LANES
    for k in (16, 8, 4, 2):
        c = _LANES * k
        if total % c == 0 and total // c >= 8:
            C = c
            break
    M = total // C
    r2 = real.reshape(M, C)
    i2 = img.reshape(M, C)

    is_v6, is_v7 = _tpu_generation()
    budget = _vmem_budget_bytes(is_v6, is_v7)

    # dtype-aware sublane rounding: 8 rows for 32-bit, 16 for bf16, 32 for int8/fp8.
    sub_mult = max(8, 32 // min(r_item, i_item))

    # Per-row VMEM of the double-buffered pipeline: 2 bufs x (in + out) x (real + imag).
    per_row_vmem = 2 * 2 * C * (r_item + i_item)
    max_rows = max(sub_mult, budget // per_row_vmem)

    # v7x: never collapse medium/large inputs to a single grid step -- split rows so the
    # "parallel" grid axis feeds both TensorCores.  No-op on 1-TC v5e/v6e.
    hbm_traffic = 2 * total * (r_item + i_item)
    if is_v7 and hbm_traffic > _V7X_SPLIT_TRAFFIC_BYTES:
        max_rows = min(max_rows, _round_up(pl.cdiv(M, 2), sub_mult))

    if M <= max_rows:
        tm = M                        # single step; full-dim block is always layout-legal
    else:
        tm = max(sub_mult, (max_rows // sub_mult) * sub_mult)
        # Rebalance within the same step count so the last block isn't a sliver.
        steps = pl.cdiv(M, tm)
        tm = max(sub_mult, _round_up(pl.cdiv(M, steps), sub_mult))
    grid = (pl.cdiv(M, tm),)

    # Raise scoped VMEM only when this tile's working set could crowd the v5e default.
    working_set = per_row_vmem * tm
    vmem_limit = None
    if working_set > (14 << 20):
        vmem_limit = min(working_set + (4 << 20), 48 << 20)

    spec = pl.BlockSpec((tm, C), lambda i: (i, 0))
    out_r, out_i = pl.pallas_call(
        _complex_relu_kernel,
        out_shape=(jax.ShapeDtypeStruct((M, C), real.dtype),
                   jax.ShapeDtypeStruct((M, C), img.dtype)),
        grid=grid,
        in_specs=[spec, spec],
        out_specs=(spec, spec),
        input_output_aliases=({0: 0, 1: 1} if in_place else {}),
        compiler_params=pltpu.CompilerParams(
            dimension_semantics=("parallel",),
            vmem_limit_bytes=vmem_limit),
    )(r2, i2)
    return out_r.reshape(orig_shape), out_i.reshape(orig_shape)


def complex_relu_layer_forward(real, img, norm_real=None, norm_imag=None, edges=None):
    """Mirrors complex_relu_layer_SigBen.forward (pass-throughs untouched)."""
    if img is None:
        # TODO(synk): replicated verbatim from the PyTorch module; upstream indexes the
        # already-reassigned `real` for norm_real/norm_imag/edges (likely an upstream bug).
        img = real[1]
        real = real[0]
        norm_real, norm_imag, edges = (real[2], real[3], real[4])
    real_out, img_out = complex_relu_pallas(real, img)
    return real_out, img_out, norm_real, norm_imag, edges


if __name__ == "__main__":
    # MagNet-style shapes: node features [num_nodes, hidden] from a ChebConv layer,
    # plus pass-through normalized Laplacians and edge index.
    N, hidden = 64, 32
    Kp1, E = 3, 128

    key = jax.random.PRNGKey(0)
    k1, k2, k3, k4, k5 = jax.random.split(key, 5)
    real = jax.random.normal(k1, (N, hidden), dtype=jnp.float32)
    img = jax.random.normal(k2, (N, hidden), dtype=jnp.float32)
    norm_real = jax.random.normal(k3, (Kp1, N, N), dtype=jnp.float32)
    norm_imag = jax.random.normal(k4, (Kp1, N, N), dtype=jnp.float32)
    edges = jax.random.randint(k5, (2, E), 0, N)

    def ref_complex_relu(r, i):
        m = (np.asarray(r) >= 0).astype(np.asarray(r).dtype)
        return m * np.asarray(r), m * np.asarray(i)

    ref_r, ref_i = ref_complex_relu(real, img)

    # (a) Full forward at the module's natural small size: routed through the fused-XLA
    #     bypass inside the wrapper (dispatch overhead dominates at 8 KiB).
    r_out, i_out, nr, ni, e = complex_relu_layer_forward(
        real, img, norm_real, norm_imag, edges)
    r_out = jax.block_until_ready(r_out)
    i_out = jax.block_until_ready(i_out)
    assert r_out.shape == (N, hidden) and i_out.shape == (N, hidden)
    np.testing.assert_allclose(np.asarray(r_out), ref_r, rtol=0, atol=0)
    np.testing.assert_allclose(np.asarray(i_out), ref_i, rtol=0, atol=0)
    assert nr is norm_real and ni is norm_imag and e is edges

    # (b) Force the Pallas kernel on the same small tensors (lane-dense: 64*32 = 8*256).
    rp, ip = complex_relu_pallas(real, img, force_pallas=True)
    rp = jax.block_until_ready(rp)
    ip = jax.block_until_ready(ip)
    np.testing.assert_allclose(np.asarray(rp), ref_r, rtol=0, atol=0)
    np.testing.assert_allclose(np.asarray(ip), ref_i, rtol=0, atol=0)

    # (c) A larger lane-dense case that exercises the tiled / parallel Pallas path
    #     (on v7x this becomes a 2-step grid split across both TensorCores).
    M2, C2 = 1024, 384
    rb = jax.random.normal(k1, (M2, C2), dtype=jnp.float32)
    ib = jax.random.normal(k2, (M2, C2), dtype=jnp.float32)
    rbo, ibo = complex_relu_pallas(rb, ib)
    rbo = jax.block_until_ready(rbo)
    ibo = jax.block_until_ready(ibo)
    ref_rb, ref_ib = ref_complex_relu(rb, ib)
    np.testing.assert_allclose(np.asarray(rbo), ref_rb, rtol=0, atol=0)
    np.testing.assert_allclose(np.asarray(ibo), ref_ib, rtol=0, atol=0)

    print("KERNEL_OK")
</pallas_src>

<mosaic_0001>
module attributes {stable_mosaic.version = 11 : i64} {
  func.func @_complex_relu_kernel(%arg0: i32, %arg1: memref<8x256xf32, #tpu.memory_space<vmem>>, %arg2: memref<8x256xf32, #tpu.memory_space<vmem>>, %arg3: memref<8x256xf32, #tpu.memory_space<vmem>>, %arg4: memref<8x256xf32, #tpu.memory_space<vmem>>) attributes {dimension_semantics = [#tpu.dimension_semantics<parallel>], iteration_bounds = array<i64: 1>, scalar_prefetch = 0 : i64, scratch_operands = 0 : i64, tpu.core_type = #tpu.core_type<tc>, window_params = [{transform_indices = @transform_0, window_bounds = array<i64: 8, 256>}, {transform_indices = @transform_1, window_bounds = array<i64: 8, 256>}, {transform_indices = @transform_2, window_bounds = array<i64: 8, 256>}, {transform_indices = @transform_3, window_bounds = array<i64: 8, 256>}]} {
    %c0 = arith.constant 0 : index
    %c0_0 = arith.constant 0 : index
    %0 = vector.load %arg1[%c0, %c0_0] : memref<8x256xf32, #tpu.memory_space<vmem>>, vector<8x256xf32>
    %cst = arith.constant 0.000000e+00 : f32
    %1 = vector.broadcast %cst : f32 to vector<8x256xf32>
    %2 = arith.cmpf oge, %0, %1 : vector<8x256xf32>
    %3 = arith.extui %2 : vector<8x256xi1> to vector<8x256xi32>
    %4 = arith.sitofp %3 : vector<8x256xi32> to vector<8x256xf32>
    %5 = arith.mulf %4, %0 : vector<8x256xf32>
    %c0_1 = arith.constant 0 : index
    %c0_2 = arith.constant 0 : index
    %6 = vector.load %arg3[%c0_1, %c0_2] : memref<8x256xf32, #tpu.memory_space<vmem>>, vector<8x256xf32>
    tpu.vector_store %arg3[%c0_1, %c0_2], %5 {strides = array<i32>} : memref<8x256xf32, #tpu.memory_space<vmem>>, vector<8x256xf32>,
    %c0_3 = arith.constant 0 : index
    %c0_4 = arith.constant 0 : index
    %7 = vector.load %arg2[%c0_3, %c0_4] : memref<8x256xf32, #tpu.memory_space<vmem>>, vector<8x256xf32>
    %8 = arith.mulf %4, %7 : vector<8x256xf32>
    %c0_5 = arith.constant 0 : index
    %c0_6 = arith.constant 0 : index
    %9 = vector.load %arg4[%c0_5, %c0_6] : memref<8x256xf32, #tpu.memory_space<vmem>>, vector<8x256xf32>
    tpu.vector_store %arg4[%c0_5, %c0_6], %8 {strides = array<i32>} : memref<8x256xf32, #tpu.memory_space<vmem>>, vector<8x256xf32>,
    return
  }
  func.func @transform_0(%arg0: i32) -> (i32, i32) {
    %c0_i32 = arith.constant 0 : i32
    %c0_i32_0 = arith.constant 0 : i32
    return %arg0, %c0_i32 : i32, i32
  }
  func.func @transform_1(%arg0: i32) -> (i32, i32) {
    %c0_i32 = arith.constant 0 : i32
    %c0_i32_0 = arith.constant 0 : i32
    return %arg0, %c0_i32 : i32, i32
  }
  func.func @transform_2(%arg0: i32) -> (i32, i32) {
    %c0_i32 = arith.constant 0 : i32
    %c0_i32_0 = arith.constant 0 : i32
    return %arg0, %c0_i32 : i32, i32
  }
  func.func @transform_3(%arg0: i32) -> (i32, i32) {
    %c0_i32 = arith.constant 0 : i32
    %c0_i32_0 = arith.constant 0 : i32
    return %arg0, %c0_i32 : i32, i32
  }
}

</mosaic_0001>

<llo_original>
// kernel: tpu_custom_call.1
$region0: #{tpu_custom_call.1}
  #allocation0 [shape = 'u32[]', space=smem, size = 0x4, offset = 0x4, fixed_abs, tag = 'smem constant byte address 0x4 - core index']
  #allocation1 [shape = 'u32[144,128]{1,0:T(1,128)}', space=vmem, size = 0x12000, scoped, tag = 'internal scratch']
  %s0 = inlined_call_operand.hbm [shape: f32[8,256], index: 0, kind: input, shape index: {}]
  %s1 = inlined_call_operand.hbm [shape: f32[8,256], index: 1, kind: input, shape index: {}]
  %s2 = inlined_call_operand.hbm [shape: f32[8,256], index: 2, kind: output, shape index: {0}]
  %s3 = inlined_call_operand.hbm [shape: f32[8,256], index: 3, kind: output, shape index: {1}]
  %4 = xla_tuple %s2, %s3
  %s5 = sld [smem:[#allocation0]]
  $region34: #{tpu_custom_call.1} parent=0
    _
  %s7 = ssub.s32 1, %s5
  %s8 = scalar_select 0, %s7, %s5
  $region1: #{tpu_custom_call.1} parent=0
    #allocation2 [shape = 'u8[8192]{0}', space=vmem, size = 0x2000, scoped, tag = 'input window, operand 0, single buffered']
    #allocation3 [shape = 's32[1]{0}', space=sflag, size = 0x4, scoped, tag = 'scoped memory for tpu_custom_call.1']
    #allocation4 [shape = 's32[1]{0}', space=sflag, size = 0x4, scoped, tag = 'scoped memory for tpu_custom_call.1']
    #allocation5 [shape = 'u8[8192]{0}', space=vmem, size = 0x2000, scoped, tag = 'input window, operand 1, single buffered']
    #allocation6 [shape = 's32[1]{0}', space=sflag, size = 0x4, scoped, tag = 'scoped memory for tpu_custom_call.1']
    #allocation7 [shape = 'u8[8192]{0}', space=vmem, size = 0x2000, scoped, tag = 'output window, operand 0, single buffered']
    #allocation8 [shape = 'u8[8192]{0}', space=vmem, size = 0x2000, scoped, tag = 'output window, operand 1, single buffered']
    #allocation9 [shape = 's32[1]{0}', space=sflag, size = 0x4, scoped, tag = 'scoped memory for tpu_custom_call.1']
    %9 = vsyncpa [#allocation3], 0
    %10 = vsyncpa [#allocation6], 0
    %11 = vsyncpa [#allocation4], 0
    %12 = vsyncpa [#allocation9], 0
    // Predicated region
    $region2: #{tpu_custom_call.1} parent=1 // pred_check
      _
    $region3: #{tpu_custom_call.1} parent=1 // pred_check_branch
      %14 = sbr.rel (0) target = $region5
    $region4: #{tpu_custom_call.1} parent=1 // pred_region
      %s16 = ssub.s32 256, 256
      %17 = vsyncadd [#allocation3], %s16
      %s19 = sshll.u32 [#allocation2], 4
      %s20 = int_to_ptr.vmem [resolvable:$true] %s19
      %22 = dma.hbm_to_vmem [thread:$0]  %s0, 256, %s20, [#allocation3]
    $region5: #{tpu_custom_call.1} parent=1 // pred_fallthru
      _
    // Predicated region
    $region6: #{tpu_custom_call.1} parent=1 // pred_check
      _
    $region7: #{tpu_custom_call.1} parent=1 // pred_check_branch
      %24 = sbr.rel (0) target = $region9
    $region8: #{tpu_custom_call.1} parent=1 // pred_region
      %s26 = ssub.s32 256, 256
      %27 = vsyncadd [#allocation6], %s26
      %s29 = sshll.u32 [#allocation5], 4
      %s30 = int_to_ptr.vmem [resolvable:$true] %s29
      %32 = dma.hbm_to_vmem [thread:$0]  %s1, 256, %s30, [#allocation6]
    $region9: #{tpu_custom_call.1} parent=1 // pred_fallthru
      _
    // Predicated region
    $region10: #{tpu_custom_call.1} parent=1 // pred_check
      _
    $region11: #{tpu_custom_call.1} parent=1 // pred_check_branch
      %34 = sbr.rel (0) target = $region13
    $region12: #{tpu_custom_call.1} parent=1 // pred_region
      %35 = dma.done [#allocation3], 256
    $region13: #{tpu_custom_call.1} parent=1 // pred_fallthru
      _
    // Predicated region
    $region14: #{tpu_custom_call.1} parent=1 // pred_check
      _
    $region15: #{tpu_custom_call.1} parent=1 // pred_check_branch
      %37 = sbr.rel (0) target = $region17
    $region16: #{tpu_custom_call.1} parent=1 // pred_region
      %38 = dma.done [#allocation6], 256
    $region17: #{tpu_custom_call.1} parent=1 // pred_fallthru
      _
    %v39 = vld [vmem:[#allocation2] sm:$0xff]
    %v40 = vld [vmem:[#allocation2 + $0x8] sm:$0xff]
    %vm41 = vcmp.ge.f32.partialorder %v39, 0.0
    %vm42 = vcmp.ge.f32.partialorder %v40, 0.0
    %v43 = vsel %vm41, 1, 0
    %v44 = vsel %vm42, 1, 0
    %v45 = vcvt.s32.f32 %v43
    %v46 = vcvt.s32.f32 %v44
    %v47 = vmul.f32 %v45, %v39
    %v48 = vmul.f32 %v46, %v40
    %49 = vst [vmem:[#allocation7] sm:$0xff] %v47
    %50 = vst [vmem:[#allocation7 + $0x8] sm:$0xff] %v48
    %v51 = vld [vmem:[#allocation5] sm:$0xff]
    %v52 = vld [vmem:[#allocation5 + $0x8] sm:$0xff]
    %v53 = vmul.f32 %v45, %v51
    %v54 = vmul.f32 %v46, %v52
    %55 = vst [vmem:[#allocation8] sm:$0xff] %v53
    %56 = vst [vmem:[#allocation8 + $0x8] sm:$0xff] %v54
    // Predicated region
    $region18: #{tpu_custom_call.1} parent=1 // pred_check
      _
    $region19: #{tpu_custom_call.1} parent=1 // pred_check_branch
      %58 = sbr.rel (0) target = $region21
    $region20: #{tpu_custom_call.1} parent=1 // pred_region
      %s60 = ssub.s32 256, 256
      %61 = vsyncadd [#allocation4], %s60
      %s63 = sshll.u32 [#allocation7], 4
      %s64 = int_to_ptr.vmem [resolvable:$true] %s63
      %66 = dma.vmem_to_hbm [thread:$0]  %s64, 256, %s2, [#allocation4]
    $region21: #{tpu_custom_call.1} parent=1 // pred_fallthru
      _
    // Predicated region
    $region22: #{tpu_custom_call.1} parent=1 // pred_check
      _
    $region23: #{tpu_custom_call.1} parent=1 // pred_check_branch
      %68 = sbr.rel (0) target = $region25
    $region24: #{tpu_custom_call.1} parent=1 // pred_region
      %s70 = ssub.s32 256, 256
      %71 = vsyncadd [#allocation9], %s70
      %s73 = sshll.u32 [#allocation8], 4
      %s74 = int_to_ptr.vmem [resolvable:$true] %s73
      %76 = dma.vmem_to_hbm [thread:$0]  %s74, 256, %s3, [#allocation9]
    $region25: #{tpu_custom_call.1} parent=1 // pred_fallthru
      _
    // Predicated region
    $region26: #{tpu_custom_call.1} parent=1 // pred_check
      _
    $region27: #{tpu_custom_call.1} parent=1 // pred_check_branch
      %78 = sbr.rel (0) target = $region29
    $region28: #{tpu_custom_call.1} parent=1 // pred_region
      %79 = dma.done [#allocation4], 256
    $region29: #{tpu_custom_call.1} parent=1 // pred_fallthru
      _
    // Predicated region
    $region30: #{tpu_custom_call.1} parent=1 // pred_check
      _
    $region31: #{tpu_custom_call.1} parent=1 // pred_check_branch
      %81 = sbr.rel (0) target = $region33
    $region32: #{tpu_custom_call.1} parent=1 // pred_region
      %82 = dma.done [#allocation9], 256
    $region33: #{tpu_custom_call.1} parent=1 // pred_fallthru
      _
    %83 = vsyncpa [#allocation3], 1
    %84 = vsyncpa [#allocation6], 1
    %85 = vsyncpa [#allocation4], 1
    %86 = vsyncpa [#allocation9], 1

</llo_original>
